<compile_context>
chip_gen: v5e
topology: v5e:2x2
jax: 0.10.0
libtpu: 0.0.40
codegen_flags: <defaults>
</compile_context>

<pallas_src>
import functools

import jax
import jax.numpy as jnp
from jax.experimental import pallas as pl
from jax.experimental.pallas import tpu as pltpu

EPS = 1e-5
LANE = 128        # lane width: last dim of every block padded to a multiple of this
SUBLANE = 8       # f32 sublane multiple for the batch dim
_VMEM_LIMIT_BYTES = 48 * 1024 * 1024   # fits v7x (64 MiB phys) as well as v5e/v6e


def _round_up(x, m):
    return (x + m - 1) // m * m


def _full_spec(shape):
    n = len(shape)
    return pl.BlockSpec(shape, lambda *_: (0,) * n)


# ----------------------------------------------------------------------------
# Fused multi-layer kernel (num_layers >= 2): all matmuls + BN + ReLU in one call.
# ----------------------------------------------------------------------------
def _make_fused_kernel(num_hidden, n_real, use_mask):
    inv_n = float(1.0 / n_real)

    def kernel(*refs):
        idx = 0
        x_ref = refs[idx]; idx += 1
        layer_refs = []
        for _ in range(num_hidden):
            layer_refs.append((refs[idx], refs[idx + 1], refs[idx + 2]))
            idx += 3
        wlast_ref = refs[idx]; idx += 1
        blast_ref = refs[idx]; idx += 1
        if use_mask:
            mask = refs[idx][...]          # (N_pad, 1) f32, 1 for real rows else 0
            idx += 1
        o_ref = refs[idx]

        h = x_ref[...]                      # (N_pad, Din_pad) f32
        for (wt_ref, g_ref, be_ref) in layer_refs:
            # bf16 MXU inputs, f32 accumulation. Hidden bias omitted: exactly
            # cancelled by batch-stat BatchNorm (mean contains it).
            z = jnp.dot(h.astype(jnp.bfloat16), wt_ref[...],
                        preferred_element_type=jnp.float32)       # (N_pad, H_pad)

            # One-pass batch statistics (padded rows are exactly zero, so sums
            # over N_pad divided by the real N are correct).
            mean = jnp.sum(z, axis=0, keepdims=True) * jnp.float32(inv_n)
            ex2 = jnp.sum(z * z, axis=0, keepdims=True) * jnp.float32(inv_n)
            var = jnp.maximum(ex2 - mean * mean, 0.0)

            # Fold BN into one scale/shift (gamma/beta zero-padded -> padded
            # feature columns stay exactly zero).
            scale = jax.lax.rsqrt(var + EPS) * g_ref[...]          # (1, H_pad)
            shift = be_ref[...] - mean * scale                     # (1, H_pad)
            h = jnp.maximum(z * scale + shift, 0.0)
            if use_mask:
                h = h * mask                                       # keep padded rows at 0

        out = jnp.dot(h.astype(jnp.bfloat16), wlast_ref[...],
                      preferred_element_type=jnp.float32) + blast_ref[...]
        o_ref[...] = out

    return kernel


def mlp_fused(x_pad, w_ts, gammas, betas, b_last, *, n_real):
    n_pad, _ = x_pad.shape
    num_hidden = len(gammas)
    use_mask = (n_pad != n_real)
    dout_pad = w_ts[-1].shape[1]

    inputs = [x_pad]
    in_specs = [_full_spec(x_pad.shape)]
    for i in range(num_hidden):
        inputs += [w_ts[i], gammas[i], betas[i]]
        in_specs += [_full_spec(w_ts[i].shape),
                     _full_spec(gammas[i].shape),
                     _full_spec(betas[i].shape)]
    inputs += [w_ts[-1], b_last]
    in_specs += [_full_spec(w_ts[-1].shape), _full_spec(b_last.shape)]
    if use_mask:
        mask = (jnp.arange(n_pad) < n_real).astype(jnp.float32).reshape(n_pad, 1)
        inputs.append(mask)
        in_specs.append(_full_spec((n_pad, 1)))

    # Rough VMEM residency guard (inputs + output + two live hidden activations).
    resident = sum(int(a.size) * a.dtype.itemsize for a in inputs)
    resident += n_pad * dout_pad * 4
    if num_hidden:
        resident += 2 * n_pad * max(w.shape[1] for w in w_ts[:-1]) * 4
    if resident > _VMEM_LIMIT_BYTES:
        # TODO(synk): switch to a per-layer Dout-tiled pipelined variant for this size.
        raise ValueError("MLP working set (%d bytes) exceeds fused-kernel VMEM budget"
                         % resident)

    flops = sum(2 * n_pad * w.shape[0] * w.shape[1] for w in w_ts)
    if num_hidden:
        flops += 6 * n_pad * sum(w.shape[1] for w in w_ts[:-1])   # BN/ReLU epilogue
    transcendentals = sum(w.shape[1] for w in w_ts[:-1])          # rsqrt per feature
    bytes_accessed = (sum(int(a.size) * a.dtype.itemsize for a in inputs)
                      + n_pad * dout_pad * 4)

    kernel = _make_fused_kernel(num_hidden, n_real, use_mask)
    return pl.pallas_call(
        kernel,
        out_shape=jax.ShapeDtypeStruct((n_pad, dout_pad), jnp.float32),
        grid=(),
        in_specs=in_specs,
        out_specs=_full_spec((n_pad, dout_pad)),
        compiler_params=pltpu.CompilerParams(vmem_limit_bytes=_VMEM_LIMIT_BYTES),
        cost_estimate=pl.CostEstimate(flops=flops,
                                      transcendentals=transcendentals,
                                      bytes_accessed=bytes_accessed),
    )(*inputs)


# ----------------------------------------------------------------------------
# Single linear layer (num_layers == 1): Dout-tiled grid, parallel semantics.
# ----------------------------------------------------------------------------
def _linear_kernel(x_ref, wt_ref, b_ref, o_ref):
    o_ref[...] = jnp.dot(x_ref[...].astype(jnp.bfloat16), wt_ref[...],
                         preferred_element_type=jnp.float32) + b_ref[...]


def linear_tiled(x_pad, wt_bf16, b_pad):
    n_pad, din_pad = x_pad.shape
    dout_pad = wt_bf16.shape[1]
    tn = next(t for t in (512, 256, 128) if dout_pad % t == 0)   # lane-dense tiles
    grid = (dout_pad // tn,)
    flops = 2 * n_pad * din_pad * dout_pad
    bytes_accessed = (int(x_pad.size) * 4 + int(wt_bf16.size) * 2
                      + int(b_pad.size) * 4 + n_pad * dout_pad * 4)
    return pl.pallas_call(
        _linear_kernel,
        out_shape=jax.ShapeDtypeStruct((n_pad, dout_pad), jnp.float32),
        grid=grid,
        in_specs=[pl.BlockSpec((n_pad, din_pad), lambda j: (0, 0)),
                  pl.BlockSpec((din_pad, tn), lambda j: (0, j)),
                  pl.BlockSpec((1, tn), lambda j: (0, j))],
        out_specs=pl.BlockSpec((n_pad, tn), lambda j: (0, j)),
        compiler_params=pltpu.CompilerParams(
            dimension_semantics=("parallel",),
            vmem_limit_bytes=_VMEM_LIMIT_BYTES),
        cost_estimate=pl.CostEstimate(flops=flops, transcendentals=0,
                                      bytes_accessed=bytes_accessed),
    )(x_pad, wt_bf16, b_pad)


# ----------------------------------------------------------------------------
# Parameters: PyTorch-style init, then a ONE-TIME transpose/pad/cast for the kernel.
# ----------------------------------------------------------------------------
def init_mlp_params(key, num_layers, input_dim, hidden_dim, output_dim):
    if num_layers < 1:
        raise ValueError("number of layers should be positive!")
    params = {"linears": [], "bns": []}
    dims = ([(input_dim, output_dim)] if num_layers == 1 else
            [(input_dim, hidden_dim)]
            + [(hidden_dim, hidden_dim)] * (num_layers - 2)
            + [(hidden_dim, output_dim)])
    for (din, dout) in dims:
        key, kw, kb = jax.random.split(key, 3)
        bound = 1.0 / float(jnp.sqrt(din))
        w = jax.random.uniform(kw, (dout, din), jnp.float32, -bound, bound)
        b = jax.random.uniform(kb, (dout,), jnp.float32, -bound, bound)
        params["linears"].append((w, b))
    for _ in range(max(num_layers - 1, 0)):
        params["bns"].append((jnp.ones((hidden_dim,), jnp.float32),
                              jnp.zeros((hidden_dim,), jnp.float32)))
    return params


def prepare_params(params, num_layers, input_dim, hidden_dim, output_dim):
    """One-time: transpose to (Din, Dout), zero-pad feature dims to multiples of 128,
    cast matmul operands to bf16.  No per-forward-call transpose / reshape remains."""
    din_pad = _round_up(input_dim, LANE)
    h_pad = _round_up(hidden_dim, LANE)
    dout_pad = _round_up(output_dim, LANE)
    linears = params["linears"]

    if num_layers == 1:
        w, b = linears[0]
        wt = jnp.zeros((din_pad, dout_pad), jnp.float32)
        wt = wt.at[:input_dim, :output_dim].set(w.T)
        b_last = jnp.zeros((1, dout_pad), jnp.float32).at[0, :output_dim].set(b)
        return {"w_t": [wt.astype(jnp.bfloat16)], "gamma": [], "beta": [],
                "b_last": b_last}

    w_t, gamma, beta = [], [], []
    for i in range(num_layers - 1):
        w, _b = linears[i]     # hidden bias dropped: exactly cancelled by batch-stat BN
        prev = input_dim if i == 0 else hidden_dim
        prev_pad = din_pad if i == 0 else h_pad
        wt = jnp.zeros((prev_pad, h_pad), jnp.float32)
        wt = wt.at[:prev, :hidden_dim].set(w.T)
        w_t.append(wt.astype(jnp.bfloat16))
        g, be = params["bns"][i]
        gamma.append(jnp.zeros((1, h_pad), jnp.float32).at[0, :hidden_dim].set(g))
        beta.append(jnp.zeros((1, h_pad), jnp.float32).at[0, :hidden_dim].set(be))

    w, b = linears[-1]
    wt = jnp.zeros((h_pad, dout_pad), jnp.float32)
    wt = wt.at[:hidden_dim, :output_dim].set(w.T)
    w_t.append(wt.astype(jnp.bfloat16))
    b_last = jnp.zeros((1, dout_pad), jnp.float32).at[0, :output_dim].set(b)
    return {"w_t": w_t, "gamma": gamma, "beta": beta, "b_last": b_last}


# ----------------------------------------------------------------------------
# Forward
# ----------------------------------------------------------------------------
@functools.partial(jax.jit, static_argnames=("num_layers", "output_dim"))
def mlp_forward(prepared, x, *, num_layers, output_dim):
    n, din = x.shape
    n_pad = _round_up(max(n, SUBLANE), SUBLANE)
    w_ts = prepared["w_t"]
    din_pad = w_ts[0].shape[0]
    x_pad = jnp.zeros((n_pad, din_pad), jnp.float32).at[:n, :din].set(x)

    if num_layers == 1:
        out_pad = linear_tiled(x_pad, w_ts[0], prepared["b_last"])
    else:
        out_pad = mlp_fused(x_pad, w_ts, prepared["gamma"], prepared["beta"],
                            prepared["b_last"], n_real=n)
    return out_pad[:n, :output_dim]


# ----------------------------------------------------------------------------
# Pure-JAX references
# ----------------------------------------------------------------------------
def mlp_forward_ref(params, x, num_layers, matmul_dtype=jnp.float32):
    def mm(a, w):
        return jnp.dot(a.astype(matmul_dtype), w.T.astype(matmul_dtype),
                       preferred_element_type=jnp.float32)

    if num_layers == 1:
        w, b = params["linears"][0]
        return mm(x, w) + b
    h = x
    for i in range(num_layers - 1):
        w, b = params["linears"][i]
        gamma, beta = params["bns"][i]
        h = mm(h, w) + b
        mean = h.mean(0, keepdims=True)
        var = ((h - mean) ** 2).mean(0, keepdims=True)
        h = (h - mean) / jnp.sqrt(var + EPS) * gamma + beta
        h = jnp.maximum(h, 0.0)
    w, b = params["linears"][-1]
    return mm(h, w) + b


if __name__ == "__main__":
    num_layers = 3
    input_dim = 16
    hidden_dim = 32
    output_dim = 8
    batch = 8

    key = jax.random.PRNGKey(0)
    key, kx = jax.random.split(key)
    x = jax.random.normal(kx, (batch, input_dim), jnp.float32)

    params = init_mlp_params(key, num_layers, input_dim, hidden_dim, output_dim)
    prepared = prepare_params(params, num_layers, input_dim, hidden_dim, output_dim)

    out = mlp_forward(prepared, x, num_layers=num_layers, output_dim=output_dim)
    jax.block_until_ready(out)
    assert out.shape == (batch, output_dim)

    # Tight check vs. a reference using the same bf16-matmul / f32-accumulate choice.
    ref_bf16 = mlp_forward_ref(params, x, num_layers, matmul_dtype=jnp.bfloat16)
    assert jnp.allclose(out, ref_bf16, atol=2e-3, rtol=2e-3), "mismatch vs bf16 reference"
    # Loose check vs. the exact f32 PyTorch-semantics reference (bf16 MXU inputs).
    ref_f32 = mlp_forward_ref(params, x, num_layers, matmul_dtype=jnp.float32)
    assert jnp.allclose(out, ref_f32, atol=5e-2, rtol=5e-2), "mismatch vs f32 reference"

    # Also exercise the single-layer (pure linear, Dout-tiled) path.
    params1 = init_mlp_params(jax.random.PRNGKey(1), 1, input_dim, hidden_dim, output_dim)
    prepared1 = prepare_params(params1, 1, input_dim, hidden_dim, output_dim)
    out1 = mlp_forward(prepared1, x, num_layers=1, output_dim=output_dim)
    jax.block_until_ready(out1)
    ref1 = mlp_forward_ref(params1, x, 1, matmul_dtype=jnp.bfloat16)
    assert out1.shape == (batch, output_dim)
    assert jnp.allclose(out1, ref1, atol=2e-3, rtol=2e-3), "mismatch (single-layer path)"

    print("KERNEL_OK")
</pallas_src>

<mosaic_0001>
module attributes {stable_mosaic.version = 11 : i64} {
  func.func @kernel(%arg0: memref<8x128xf32, #tpu.memory_space<vmem>>, %arg1: memref<128x128xbf16, #tpu.memory_space<vmem>>, %arg2: memref<1x128xf32, #tpu.memory_space<vmem>>, %arg3: memref<1x128xf32, #tpu.memory_space<vmem>>, %arg4: memref<128x128xbf16, #tpu.memory_space<vmem>>, %arg5: memref<1x128xf32, #tpu.memory_space<vmem>>, %arg6: memref<1x128xf32, #tpu.memory_space<vmem>>, %arg7: memref<128x128xbf16, #tpu.memory_space<vmem>>, %arg8: memref<1x128xf32, #tpu.memory_space<vmem>>, %arg9: memref<8x128xf32, #tpu.memory_space<vmem>>) attributes {dimension_semantics = [], scalar_prefetch = 0 : i64, scratch_operands = 0 : i64, tpu.core_type = #tpu.core_type<tc>} {
    %c0 = arith.constant 0 : index
    %c0_0 = arith.constant 0 : index
    %0 = vector.load %arg0[%c0, %c0_0] : memref<8x128xf32, #tpu.memory_space<vmem>>, vector<8x128xf32>
    %1 = arith.truncf %0 : vector<8x128xf32> to vector<8x128xbf16>
    %c0_1 = arith.constant 0 : index
    %c0_2 = arith.constant 0 : index
    %2 = vector.load %arg1[%c0_1, %c0_2] : memref<128x128xbf16, #tpu.memory_space<vmem>>, vector<128x128xbf16>
    %cst = arith.constant dense<0.000000e+00> : vector<8x128xf32>
    %3 = tpu.matmul %1, %2, %cst {dimension_numbers = #tpu.dot_dimension_numbers<[1], [0], [0], [1], [0, 0, 1, 1], [], []>} : vector<8x128xbf16>, vector<128x128xbf16>, vector<8x128xf32> -> vector<8x128xf32>
    %cst_3 = arith.constant dense<0.000000e+00> : vector<128xf32>
    %4 = vector.multi_reduction <add>, %3, %cst_3 [0] : vector<8x128xf32> to vector<128xf32>
    %5 = vector.shape_cast %4 : vector<128xf32> to vector<1x128xf32>
    %cst_4 = arith.constant 1.250000e-01 : f32
    %6 = vector.broadcast %cst_4 : f32 to vector<1x128xf32>
    %7 = arith.mulf %5, %6 : vector<1x128xf32>
    %8 = arith.mulf %3, %3 : vector<8x128xf32>
    %cst_5 = arith.constant dense<0.000000e+00> : vector<128xf32>
    %9 = vector.multi_reduction <add>, %8, %cst_5 [0] : vector<8x128xf32> to vector<128xf32>
    %10 = vector.shape_cast %9 : vector<128xf32> to vector<1x128xf32>
    %cst_6 = arith.constant 1.250000e-01 : f32
    %11 = vector.broadcast %cst_6 : f32 to vector<1x128xf32>
    %12 = arith.mulf %10, %11 : vector<1x128xf32>
    %13 = arith.mulf %7, %7 : vector<1x128xf32>
    %14 = arith.subf %12, %13 : vector<1x128xf32>
    %cst_7 = arith.constant 0.000000e+00 : f32
    %15 = vector.broadcast %cst_7 : f32 to vector<1x128xf32>
    %16 = arith.maximumf %14, %15 : vector<1x128xf32>
    %cst_8 = arith.constant 9.99999974E-6 : f32
    %17 = vector.broadcast %cst_8 : f32 to vector<1x128xf32>
    %18 = arith.addf %16, %17 : vector<1x128xf32>
    %19 = math.rsqrt %18 : vector<1x128xf32>
    %c0_9 = arith.constant 0 : index
    %c0_10 = arith.constant 0 : index
    %20 = vector.load %arg2[%c0_9, %c0_10] : memref<1x128xf32, #tpu.memory_space<vmem>>, vector<1x128xf32>
    %21 = arith.mulf %19, %20 : vector<1x128xf32>
    %c0_11 = arith.constant 0 : index
    %c0_12 = arith.constant 0 : index
    %22 = vector.load %arg3[%c0_11, %c0_12] : memref<1x128xf32, #tpu.memory_space<vmem>>, vector<1x128xf32>
    %23 = arith.mulf %7, %21 : vector<1x128xf32>
    %24 = arith.subf %22, %23 : vector<1x128xf32>
    %25 = vector.broadcast %21 : vector<1x128xf32> to vector<8x128xf32>
    %26 = arith.mulf %3, %25 : vector<8x128xf32>
    %27 = vector.broadcast %24 : vector<1x128xf32> to vector<8x128xf32>
    %28 = arith.addf %26, %27 : vector<8x128xf32>
    %cst_13 = arith.constant 0.000000e+00 : f32
    %29 = vector.broadcast %cst_13 : f32 to vector<8x128xf32>
    %30 = arith.maximumf %28, %29 : vector<8x128xf32>
    %31 = arith.truncf %30 : vector<8x128xf32> to vector<8x128xbf16>
    %c0_14 = arith.constant 0 : index
    %c0_15 = arith.constant 0 : index
    %32 = vector.load %arg4[%c0_14, %c0_15] : memref<128x128xbf16, #tpu.memory_space<vmem>>, vector<128x128xbf16>
    %cst_16 = arith.constant dense<0.000000e+00> : vector<8x128xf32>
    %33 = tpu.matmul %31, %32, %cst_16 {dimension_numbers = #tpu.dot_dimension_numbers<[1], [0], [0], [1], [0, 0, 1, 1], [], []>} : vector<8x128xbf16>, vector<128x128xbf16>, vector<8x128xf32> -> vector<8x128xf32>
    %cst_17 = arith.constant dense<0.000000e+00> : vector<128xf32>
    %34 = vector.multi_reduction <add>, %33, %cst_17 [0] : vector<8x128xf32> to vector<128xf32>
    %35 = vector.shape_cast %34 : vector<128xf32> to vector<1x128xf32>
    %cst_18 = arith.constant 1.250000e-01 : f32
    %36 = vector.broadcast %cst_18 : f32 to vector<1x128xf32>
    %37 = arith.mulf %35, %36 : vector<1x128xf32>
    %38 = arith.mulf %33, %33 : vector<8x128xf32>
    %cst_19 = arith.constant dense<0.000000e+00> : vector<128xf32>
    %39 = vector.multi_reduction <add>, %38, %cst_19 [0] : vector<8x128xf32> to vector<128xf32>
    %40 = vector.shape_cast %39 : vector<128xf32> to vector<1x128xf32>
    %cst_20 = arith.constant 1.250000e-01 : f32
    %41 = vector.broadcast %cst_20 : f32 to vector<1x128xf32>
    %42 = arith.mulf %40, %41 : vector<1x128xf32>
    %43 = arith.mulf %37, %37 : vector<1x128xf32>
    %44 = arith.subf %42, %43 : vector<1x128xf32>
    %cst_21 = arith.constant 0.000000e+00 : f32
    %45 = vector.broadcast %cst_21 : f32 to vector<1x128xf32>
    %46 = arith.maximumf %44, %45 : vector<1x128xf32>
    %cst_22 = arith.constant 9.99999974E-6 : f32
    %47 = vector.broadcast %cst_22 : f32 to vector<1x128xf32>
    %48 = arith.addf %46, %47 : vector<1x128xf32>
    %49 = math.rsqrt %48 : vector<1x128xf32>
    %c0_23 = arith.constant 0 : index
    %c0_24 = arith.constant 0 : index
    %50 = vector.load %arg5[%c0_23, %c0_24] : memref<1x128xf32, #tpu.memory_space<vmem>>, vector<1x128xf32>
    %51 = arith.mulf %49, %50 : vector<1x128xf32>
    %c0_25 = arith.constant 0 : index
    %c0_26 = arith.constant 0 : index
    %52 = vector.load %arg6[%c0_25, %c0_26] : memref<1x128xf32, #tpu.memory_space<vmem>>, vector<1x128xf32>
    %53 = arith.mulf %37, %51 : vector<1x128xf32>
    %54 = arith.subf %52, %53 : vector<1x128xf32>
    %55 = vector.broadcast %51 : vector<1x128xf32> to vector<8x128xf32>
    %56 = arith.mulf %33, %55 : vector<8x128xf32>
    %57 = vector.broadcast %54 : vector<1x128xf32> to vector<8x128xf32>
    %58 = arith.addf %56, %57 : vector<8x128xf32>
    %cst_27 = arith.constant 0.000000e+00 : f32
    %59 = vector.broadcast %cst_27 : f32 to vector<8x128xf32>
    %60 = arith.maximumf %58, %59 : vector<8x128xf32>
    %61 = arith.truncf %60 : vector<8x128xf32> to vector<8x128xbf16>
    %c0_28 = arith.constant 0 : index
    %c0_29 = arith.constant 0 : index
    %62 = vector.load %arg7[%c0_28, %c0_29] : memref<128x128xbf16, #tpu.memory_space<vmem>>, vector<128x128xbf16>
    %cst_30 = arith.constant dense<0.000000e+00> : vector<8x128xf32>
    %63 = tpu.matmul %61, %62, %cst_30 {dimension_numbers = #tpu.dot_dimension_numbers<[1], [0], [0], [1], [0, 0, 1, 1], [], []>} : vector<8x128xbf16>, vector<128x128xbf16>, vector<8x128xf32> -> vector<8x128xf32>
    %c0_31 = arith.constant 0 : index
    %c0_32 = arith.constant 0 : index
    %64 = vector.load %arg8[%c0_31, %c0_32] : memref<1x128xf32, #tpu.memory_space<vmem>>, vector<1x128xf32>
    %65 = vector.broadcast %64 : vector<1x128xf32> to vector<8x128xf32>
    %66 = arith.addf %63, %65 : vector<8x128xf32>
    %c0_33 = arith.constant 0 : index
    %c0_34 = arith.constant 0 : index
    %67 = vector.load %arg9[%c0_33, %c0_34] : memref<8x128xf32, #tpu.memory_space<vmem>>, vector<8x128xf32>
    tpu.vector_store %arg9[%c0_33, %c0_34], %66 {strides = array<i32>} : memref<8x128xf32, #tpu.memory_space<vmem>>, vector<8x128xf32>,
    return
  }
}

</mosaic_0001>

<llo_original>
// kernel: mlp_forward.1
$region0: #{mlp_forward.1}
  #allocation0 [shape = 'u32[]', space=smem, size = 0x4, offset = 0x4, fixed_abs, tag = 'smem constant byte address 0x4 - core index']
  #allocation1 [shape = 'u32[72,128]{1,0:T(1,128)}', space=vmem, size = 0x9000, scoped, tag = 'internal scratch']
  %s0 = inlined_call_operand.vmem [shape: f32[8,128], index: 0, kind: input, shape index: {}]
  %s1 = inlined_call_operand.hbm [shape: bf16[128,128], index: 1, kind: input, shape index: {}]
  %s2 = inlined_call_operand.vmem [shape: f32[1,128], index: 2, kind: input, shape index: {}]
  %s3 = inlined_call_operand.vmem [shape: f32[1,128], index: 3, kind: input, shape index: {}]
  %s4 = inlined_call_operand.hbm [shape: bf16[128,128], index: 4, kind: input, shape index: {}]
  %s5 = inlined_call_operand.vmem [shape: f32[1,128], index: 5, kind: input, shape index: {}]
  %s6 = inlined_call_operand.vmem [shape: f32[1,128], index: 6, kind: input, shape index: {}]
  %s7 = inlined_call_operand.hbm [shape: bf16[128,128], index: 7, kind: input, shape index: {}]
  %s8 = inlined_call_operand.vmem [shape: f32[1,128], index: 8, kind: input, shape index: {}]
  %s9 = inlined_call_operand.hbm [shape: f32[8,128], index: 9, kind: output, shape index: {}]
  %s10 = sld [smem:[#allocation0]]
  $region58: #{mlp_forward.1} parent=0
    _
  %s12 = ssub.s32 1, %s10
  %s13 = scalar_select 0, %s12, %s10
  $region1: #{mlp_forward.1} parent=0
    #allocation2 [shape = 'u8[32768]{0}', space=vmem, size = 0x8000, scoped, tag = 'input window, operand 1, single buffered']
    #allocation3 [shape = 's32[1]{0}', space=sflag, size = 0x4, scoped, tag = 'scoped memory for mlp_forward.1']
    #allocation4 [shape = 's32[1]{0}', space=sflag, size = 0x4, scoped, tag = 'scoped memory for mlp_forward.1']
    #allocation5 [shape = 'u8[32768]{0}', space=vmem, size = 0x8000, scoped, tag = 'input window, operand 4, single buffered']
    #allocation6 [shape = 's32[1]{0}', space=sflag, size = 0x4, scoped, tag = 'scoped memory for mlp_forward.1']
    #allocation7 [shape = 'u8[32768]{0}', space=vmem, size = 0x8000, scoped, tag = 'input window, operand 7, single buffered']
    #allocation8 [shape = 'u8[4096]{0}', space=vmem, size = 0x1000, scoped, tag = 'output window, operand 0, single buffered']
    %14 = vsyncpa [#allocation3], 0
    %15 = vsyncpa [#allocation6], 0
    %16 = vsyncpa [#allocation4], 0
    // Predicated region
    $region2: #{mlp_forward.1} parent=1 // pred_check
      _
    $region3: #{mlp_forward.1} parent=1 // pred_check_branch
      %18 = sbr.rel (0) target = $region5
    $region4: #{mlp_forward.1} parent=1 // pred_region
      _
    $region5: #{mlp_forward.1} parent=1 // pred_fallthru
      _
    // Predicated region
    $region6: #{mlp_forward.1} parent=1 // pred_check
      _
    $region7: #{mlp_forward.1} parent=1 // pred_check_branch
      %20 = sbr.rel (0) target = $region9
    $region8: #{mlp_forward.1} parent=1 // pred_region
      %22 = vsyncadd [#allocation3], 0
      %s23 = sshll.u32 %s1, 4
      %s24 = int_to_ptr.hbm [resolvable:$true] %s23
      %s25 = sshll.u32 [#allocation2], 4
      %s26 = int_to_ptr.vmem [resolvable:$true] %s25
      %31 = dma.hbm_to_vmem [thread:$0]  %s24, 1024, %s26, [#allocation3], 64, 64, 4
    $region9: #{mlp_forward.1} parent=1 // pred_fallthru
      _
    // Predicated region
    $region10: #{mlp_forward.1} parent=1 // pred_check
      _
    $region11: #{mlp_forward.1} parent=1 // pred_check_branch
      %33 = sbr.rel (0) target = $region13
    $region12: #{mlp_forward.1} parent=1 // pred_region
      _
    $region13: #{mlp_forward.1} parent=1 // pred_fallthru
      _
    // Predicated region
    $region14: #{mlp_forward.1} parent=1 // pred_check
      _
    $region15: #{mlp_forward.1} parent=1 // pred_check_branch
      %35 = sbr.rel (0) target = $region17
    $region16: #{mlp_forward.1} parent=1 // pred_region
      _
    $region17: #{mlp_forward.1} parent=1 // pred_fallthru
      _
    // Predicated region
    $region18: #{mlp_forward.1} parent=1 // pred_check
      _
    $region19: #{mlp_forward.1} parent=1 // pred_check_branch
      %37 = sbr.rel (0) target = $region21
    $region20: #{mlp_forward.1} parent=1 // pred_region
      %39 = vsyncadd [#allocation6], 0
      %s40 = sshll.u32 %s4, 4
      %s41 = int_to_ptr.hbm [resolvable:$true] %s40
      %s42 = sshll.u32 [#allocation5], 4
      %s43 = int_to_ptr.vmem [resolvable:$true] %s42
      %48 = dma.hbm_to_vmem [thread:$0]  %s41, 1024, %s43, [#allocation6], 64, 64, 4
    $region21: #{mlp_forward.1} parent=1 // pred_fallthru
      _
    // Predicated region
    $region22: #{mlp_forward.1} parent=1 // pred_check
      _
    $region23: #{mlp_forward.1} parent=1 // pred_check_branch
      %50 = sbr.rel (0) target = $region25
    $region24: #{mlp_forward.1} parent=1 // pred_region
      _
    $region25: #{mlp_forward.1} parent=1 // pred_fallthru
      _
    // Predicated region
    $region26: #{mlp_forward.1} parent=1 // pred_check
      _
    $region27: #{mlp_forward.1} parent=1 // pred_check_branch
      %52 = sbr.rel (0) target = $region29
    $region28: #{mlp_forward.1} parent=1 // pred_region
      _
    $region29: #{mlp_forward.1} parent=1 // pred_fallthru
      _
    // Predicated region
    $region30: #{mlp_forward.1} parent=1 // pred_check
      _
    $region31: #{mlp_forward.1} parent=1 // pred_check_branch
      %54 = sbr.rel (0) target = $region33
    $region32: #{mlp_forward.1} parent=1 // pred_region
      %56 = vsyncadd [#allocation6], 0
      %s57 = sshll.u32 %s7, 4
      %s58 = int_to_ptr.hbm [resolvable:$true] %s57
      %s59 = sshll.u32 [#allocation7], 4
      %s60 = int_to_ptr.vmem [resolvable:$true] %s59
      %65 = dma.hbm_to_vmem [thread:$0]  %s58, 1024, %s60, [#allocation6], 64, 64, 4
    $region33: #{mlp_forward.1} parent=1 // pred_fallthru
      _
    // Predicated region
    $region34: #{mlp_forward.1} parent=1 // pred_check
      _
    $region35: #{mlp_forward.1} parent=1 // pred_check_branch
      %67 = sbr.rel (0) target = $region37
    $region36: #{mlp_forward.1} parent=1 // pred_region
      _
    $region37: #{mlp_forward.1} parent=1 // pred_fallthru
      _
    // Predicated region
    $region38: #{mlp_forward.1} parent=1 // pred_check
      _
    $region39: #{mlp_forward.1} parent=1 // pred_check_branch
      %69 = sbr.rel (0) target = $region41
    $region40: #{mlp_forward.1} parent=1 // pred_region
      %71 = dma.done [#allocation3], 1024
    $region41: #{mlp_forward.1} parent=1 // pred_fallthru
      _
    // Predicated region
    $region42: #{mlp_forward.1} parent=1 // pred_check
      _
    $region43: #{mlp_forward.1} parent=1 // pred_check_branch
      %73 = sbr.rel (0) target = $region45
    $region44: #{mlp_forward.1} parent=1 // pred_region
      %75 = dma.done [#allocation6], 1024
    $region45: #{mlp_forward.1} parent=1 // pred_fallthru
      _
    // Predicated region
    $region46: #{mlp_forward.1} parent=1 // pred_check
      _
    $region47: #{mlp_forward.1} parent=1 // pred_check_branch
      %77 = sbr.rel (0) target = $region49
    $region48: #{mlp_forward.1} parent=1 // pred_region
      %79 = dma.done [#allocation6], 1024
    $region49: #{mlp_forward.1} parent=1 // pred_fallthru
      _
    %v80 = vld [vmem:[%s0] sm:$0xff]
    %v81 = vpack.c.bf16 %v80, %v80
    %v82 = vld [vmem:[#allocation2] sm:$0xf]
    %v83 = vld [vmem:[#allocation2 + $0x4] sm:$0xf]
    %v84 = vld [vmem:[#allocation2 + $0x8] sm:$0xf]
    %v85 = vld [vmem:[#allocation2 + $0xc] sm:$0xf]
    %v86 = vld [vmem:[#allocation2 + $0x10] sm:$0xf]
    %v87 = vld [vmem:[#allocation2 + $0x14] sm:$0xf]
    %v88 = vld [vmem:[#allocation2 + $0x18] sm:$0xf]
    %v89 = vld [vmem:[#allocation2 + $0x1c] sm:$0xf]
    %v90 = vld [vmem:[#allocation2 + $0x20] sm:$0xf]
    %v91 = vld [vmem:[#allocation2 + $0x24] sm:$0xf]
    %v92 = vld [vmem:[#allocation2 + $0x28] sm:$0xf]
    %v93 = vld [vmem:[#allocation2 + $0x2c] sm:$0xf]
    %v94 = vld [vmem:[#allocation2 + $0x30] sm:$0xf]
    %v95 = vld [vmem:[#allocation2 + $0x34] sm:$0xf]
    %v96 = vld [vmem:[#allocation2 + $0x38] sm:$0xf]
    %v97 = vld [vmem:[#allocation2 + $0x3c] sm:$0xf]
    %v114 = vunpack.c.l.b16 %v82
    %v115 = vunpack.c.l.b16 %v83
    %v116 = vunpack.c.l.b16 %v84
    %v117 = vunpack.c.l.b16 %v85
    %v118 = vunpack.c.l.b16 %v86
    %v119 = vunpack.c.l.b16 %v87
    %v120 = vunpack.c.l.b16 %v88
    %v121 = vunpack.c.l.b16 %v89
    %v122 = vunpack.c.l.b16 %v90
    %v123 = vunpack.c.l.b16 %v91
    %v124 = vunpack.c.l.b16 %v92
    %v125 = vunpack.c.l.b16 %v93
    %v126 = vunpack.c.l.b16 %v94
    %v127 = vunpack.c.l.b16 %v95
    %v128 = vunpack.c.l.b16 %v96
    %v129 = vunpack.c.l.b16 %v97
    %v130 = vpack.c.b16 %v115, %v114
    %v131 = vpack.c.b16 %v117, %v116
    %v132 = vpack.c.b16 %v119, %v118
    %v133 = vpack.c.b16 %v121, %v120
    %v134 = vpack.c.b16 %v123, %v122
    %v135 = vpack.c.b16 %v125, %v124
    %v136 = vpack.c.b16 %v127, %v126
    %v137 = vpack.c.b16 %v129, %v128
    %146 = vmatpush.bf16.msra.mxu0 %v137
    %147 = vmatpush.bf16.msra.mxu0 %v136
    %148 = vmatpush.bf16.msra.mxu0 %v135
    %149 = vmatpush.bf16.msra.mxu0 %v134
    %150 = vmatpush.bf16.msra.mxu0 %v133
    %151 = vmatpush.bf16.msra.mxu0 %v132
    %152 = vmatpush.bf16.msra.mxu0 %v131
    %153 = vmatpush.bf16.msra.mxu0 %v130
    %154 = vmatmul.bf16.gmra.mxu0 %v81
    %v155 = vpop.f32.mrf.mxu0
    %v156 = vadd.f32 0.0, %v155
    %v157 = vpop.f32.mrf.mxu0
    %158 = vdwg.mxu0
    %v159 = vrot.slane %v156, 4
    %v160 = vadd.f32 %v156, %v159
    %v161 = vrot.slane %v160, 2
    %v162 = vadd.f32 %v160, %v161
    %v163 = vrot.slane %v162, 1
    %v164 = vadd.f32 %v162, %v163
    %v165 = vmul.f32 %v164, 0.125
    %v166 = vmul.f32 %v156, %v156
    %v167 = vrot.slane %v166, 4
    %v168 = vadd.f32 %v166, %v167
    %v169 = vrot.slane %v168, 2
    %v170 = vadd.f32 %v168, %v169
    %v171 = vrot.slane %v170, 1
    %v172 = vadd.f32 %v170, %v171
    %v173 = vmul.f32 %v172, 0.125
    %v174 = vmul.f32 %v165, %v165
    %v175 = vsub.f32 %v173, %v174
    %v176 = vmax.f32 %v175, 0.0
    %v177 = vadd.f32 %v176, 1e-05
    %v178 = vrsqrt.pop %v177
    %v179 = vmul.f32 %v178, %v177
    %v180 = vmul.f32 %v179, %v178
    %v181 = vmul.f32 0.5, %v180
    %v182 = vsub.f32 1.5, %v181
    %v183 = vmul.f32 %v178, %v182
    %vm184 = vweird.f32 %v177
    %vm185 = vweird.f32 %v178
    %vm186 = vmor %vm184, %vm185
    %v187 = vsel %vm186, %v178, %v183
    %v188 = vld [vmem:[%s2] sm:$0x1]
    %v189 = vmul.f32 %v187, %v188
    %v190 = vld [vmem:[%s3] sm:$0x1]
    %v191 = vmul.f32 %v165, %v189
    %v192 = vsub.f32 %v190, %v191
    %v193 = vperm.slane %v189, 0
    %v194 = vmul.f32 %v156, %v193
    %v196 = vperm.slane %v192, 0
    %v198 = vadd.f32 %v194, %v196
    %v199 = vmax.f32 %v198, 0.0
    %v200 = vpack.c.bf16 %v199, %v199
    %v201 = vld [vmem:[#allocation5] sm:$0xf]
    %v202 = vld [vmem:[#allocation5 + $0x4] sm:$0xf]
    %v203 = vld [vmem:[#allocation5 + $0x8] sm:$0xf]
    %v204 = vld [vmem:[#allocation5 + $0xc] sm:$0xf]
    %v205 = vld [vmem:[#allocation5 + $0x10] sm:$0xf]
    %v206 = vld [vmem:[#allocation5 + $0x14] sm:$0xf]
    %v207 = vld [vmem:[#allocation5 + $0x18] sm:$0xf]
    %v208 = vld [vmem:[#allocation5 + $0x1c] sm:$0xf]
    %v209 = vld [vmem:[#allocation5 + $0x20] sm:$0xf]
    %v210 = vld [vmem:[#allocation5 + $0x24] sm:$0xf]
    %v211 = vld [vmem:[#allocation5 + $0x28] sm:$0xf]
    %v212 = vld [vmem:[#allocation5 + $0x2c] sm:$0xf]
    %v213 = vld [vmem:[#allocation5 + $0x30] sm:$0xf]
    %v214 = vld [vmem:[#allocation5 + $0x34] sm:$0xf]
    %v215 = vld [vmem:[#allocation5 + $0x38] sm:$0xf]
    %v216 = vld [vmem:[#allocation5 + $0x3c] sm:$0xf]
    %v233 = vunpack.c.l.b16 %v201
    %v234 = vunpack.c.l.b16 %v202
    %v235 = vunpack.c.l.b16 %v203
    %v236 = vunpack.c.l.b16 %v204
    %v237 = vunpack.c.l.b16 %v205
    %v238 = vunpack.c.l.b16 %v206
    %v239 = vunpack.c.l.b16 %v207
    %v240 = vunpack.c.l.b16 %v208
    %v241 = vunpack.c.l.b16 %v209
    %v242 = vunpack.c.l.b16 %v210
    %v243 = vunpack.c.l.b16 %v211
    %v244 = vunpack.c.l.b16 %v212
    %v245 = vunpack.c.l.b16 %v213
    %v246 = vunpack.c.l.b16 %v214
    %v247 = vunpack.c.l.b16 %v215
    %v248 = vunpack.c.l.b16 %v216
    %v249 = vpack.c.b16 %v234, %v233
    %v250 = vpack.c.b16 %v236, %v235
    %v251 = vpack.c.b16 %v238, %v237
    %v252 = vpack.c.b16 %v240, %v239
    %v253 = vpack.c.b16 %v242, %v241
    %v254 = vpack.c.b16 %v244, %v243
    %v255 = vpack.c.b16 %v246, %v245
    %v256 = vpack.c.b16 %v248, %v247
    %265 = vmatpush.bf16.msra.mxu0 %v256
    %266 = vmatpush.bf16.msra.mxu0 %v255
    %267 = vmatpush.bf16.msra.mxu0 %v254
    %268 = vmatpush.bf16.msra.mxu0 %v253
    %269 = vmatpush.bf16.msra.mxu0 %v252
    %270 = vmatpush.bf16.msra.mxu0 %v251
    %271 = vmatpush.bf16.msra.mxu0 %v250
    %272 = vmatpush.bf16.msra.mxu0 %v249
    %273 = vmatmul.bf16.gmra.mxu0 %v200
    %v274 = vpop.f32.mrf.mxu0
    %v275 = vadd.f32 0.0, %v274
    %v276 = vpop.f32.mrf.mxu0
    %277 = vdwg.mxu0
    %v278 = vrot.slane %v275, 4
    %v279 = vadd.f32 %v275, %v278
    %v280 = vrot.slane %v279, 2
    %v281 = vadd.f32 %v279, %v280
    %v282 = vrot.slane %v281, 1
    %v283 = vadd.f32 %v281, %v282
    %v284 = vmul.f32 %v283, 0.125
    %v285 = vmul.f32 %v275, %v275
    %v286 = vrot.slane %v285, 4
    %v287 = vadd.f32 %v285, %v286
    %v288 = vrot.slane %v287, 2
    %v289 = vadd.f32 %v287, %v288
    %v290 = vrot.slane %v289, 1
    %v291 = vadd.f32 %v289, %v290
    %v292 = vmul.f32 %v291, 0.125
    %v293 = vmul.f32 %v284, %v284
    %v294 = vsub.f32 %v292, %v293
    %v295 = vmax.f32 %v294, 0.0
    %v296 = vadd.f32 %v295, 1e-05
    %v297 = vrsqrt.pop %v296
    %v298 = vmul.f32 %v297, %v296
    %v299 = vmul.f32 %v298, %v297
    %v300 = vmul.f32 0.5, %v299
    %v301 = vsub.f32 1.5, %v300
    %v302 = vmul.f32 %v297, %v301
    %vm303 = vweird.f32 %v296
    %vm304 = vweird.f32 %v297
    %vm305 = vmor %vm303, %vm304
    %v306 = vsel %vm305, %v297, %v302
    %v307 = vld [vmem:[%s5] sm:$0x1]
    %v308 = vmul.f32 %v306, %v307
    %v309 = vld [vmem:[%s6] sm:$0x1]
    %v310 = vmul.f32 %v284, %v308
    %v311 = vsub.f32 %v309, %v310
    %v312 = vperm.slane %v308, 0
    %v313 = vmul.f32 %v275, %v312
    %v315 = vperm.slane %v311, 0
    %v317 = vadd.f32 %v313, %v315
    %v318 = vmax.f32 %v317, 0.0
    %v319 = vpack.c.bf16 %v318, %v318
    %v320 = vld [vmem:[#allocation7] sm:$0xf]
    %v321 = vld [vmem:[#allocation7 + $0x4] sm:$0xf]
    %v322 = vld [vmem:[#allocation7 + $0x8] sm:$0xf]
    %v323 = vld [vmem:[#allocation7 + $0xc] sm:$0xf]
    %v324 = vld [vmem:[#allocation7 + $0x10] sm:$0xf]
    %v325 = vld [vmem:[#allocation7 + $0x14] sm:$0xf]
    %v326 = vld [vmem:[#allocation7 + $0x18] sm:$0xf]
    %v327 = vld [vmem:[#allocation7 + $0x1c] sm:$0xf]
    %v328 = vld [vmem:[#allocation7 + $0x20] sm:$0xf]
    %v329 = vld [vmem:[#allocation7 + $0x24] sm:$0xf]
    %v330 = vld [vmem:[#allocation7 + $0x28] sm:$0xf]
    %v331 = vld [vmem:[#allocation7 + $0x2c] sm:$0xf]
    %v332 = vld [vmem:[#allocation7 + $0x30] sm:$0xf]
    %v333 = vld [vmem:[#allocation7 + $0x34] sm:$0xf]
    %v334 = vld [vmem:[#allocation7 + $0x38] sm:$0xf]
    %v335 = vld [vmem:[#allocation7 + $0x3c] sm:$0xf]
    %v336 = vld [vmem:[%s8] sm:$0x1]
    %v338 = vperm.slane %v336, 0
    %v356 = vunpack.c.l.b16 %v320
    %v357 = vunpack.c.l.b16 %v321
    %v358 = vunpack.c.l.b16 %v322
    %v359 = vunpack.c.l.b16 %v323
    %v360 = vunpack.c.l.b16 %v324
    %v361 = vunpack.c.l.b16 %v325
    %v362 = vunpack.c.l.b16 %v326
    %v363 = vunpack.c.l.b16 %v327
    %v364 = vunpack.c.l.b16 %v328
    %v365 = vunpack.c.l.b16 %v329
    %v366 = vunpack.c.l.b16 %v330
    %v367 = vunpack.c.l.b16 %v331
    %v368 = vunpack.c.l.b16 %v332
    %v369 = vunpack.c.l.b16 %v333
    %v370 = vunpack.c.l.b16 %v334
    %v371 = vunpack.c.l.b16 %v335
    %v372 = vpack.c.b16 %v357, %v356
    %v373 = vpack.c.b16 %v359, %v358
    %v374 = vpack.c.b16 %v361, %v360
    %v375 = vpack.c.b16 %v363, %v362
    %v376 = vpack.c.b16 %v365, %v364
    %v377 = vpack.c.b16 %v367, %v366
    %v378 = vpack.c.b16 %v369, %v368
    %v379 = vpack.c.b16 %v371, %v370
    %388 = vmatpush.bf16.msra.mxu0 %v379
    %389 = vmatpush.bf16.msra.mxu0 %v378
    %390 = vmatpush.bf16.msra.mxu0 %v377
    %391 = vmatpush.bf16.msra.mxu0 %v376
    %392 = vmatpush.bf16.msra.mxu0 %v375
    %393 = vmatpush.bf16.msra.mxu0 %v374
    %394 = vmatpush.bf16.msra.mxu0 %v373
    %395 = vmatpush.bf16.msra.mxu0 %v372
    %396 = vmatmul.bf16.gmra.mxu0 %v319
    %v397 = vpop.f32.mrf.mxu0
    %v398 = vadd.f32 %v338, %v397
    %v399 = vpop.f32.mrf.mxu0
    %400 = vdwg.mxu0
    %401 = vst [vmem:[#allocation8] sm:$0xff] %v398
    // Predicated region
    $region50: #{mlp_forward.1} parent=1 // pred_check
      _
    $region51: #{mlp_forward.1} parent=1 // pred_check_branch
      %403 = sbr.rel (0) target = $region53
    $region52: #{mlp_forward.1} parent=1 // pred_region
      %405 = vsyncadd [#allocation4], 0
      %s407 = sshll.u32 [#allocation8], 4
      %s408 = int_to_ptr.vmem [resolvable:$true] %s407
      %s409 = sshll.u32 %s9, 4
      %s410 = int_to_ptr.hbm [resolvable:$true] %s409
      %412 = dma.vmem_to_hbm [thread:$0]  %s408, 128, %s410, [#allocation4]
    $region53: #{mlp_forward.1} parent=1 // pred_fallthru
      _
    // Predicated region
    $region54: #{mlp_forward.1} parent=1 // pred_check
      _
    $region55: #{mlp_forward.1} parent=1 // pred_check_branch
      %414 = sbr.rel (0) target = $region57
    $region56: #{mlp_forward.1} parent=1 // pred_region
      %416 = dma.done [#allocation4], 128
    $region57: #{mlp_forward.1} parent=1 // pred_fallthru
      _
    %417 = vsyncpa [#allocation3], 1
    %418 = vsyncpa [#allocation6], 1
    %419 = vsyncpa [#allocation4], 1

</llo_original>
